<compile_context>
chip_gen: v7x
topology: tpu7x:2x2x1
jax: 0.10.0
libtpu: 0.0.40
codegen_flags: <defaults>
</compile_context>

<pallas_src>
import functools

import jax
import jax.numpy as jnp
from jax.experimental import pallas as pl
from jax.experimental.pallas import tpu as pltpu


# ---------------------------------------------------------------------------
# Kernels
# ---------------------------------------------------------------------------

def _decoder_kernel_single(x_ref, w_ref, b_ref, o_ref, *, apply_sigmoid):
    """out = [sigmoid](x @ W + b); one MXU dot with f32 accumulation."""
    y = jnp.dot(x_ref[...], w_ref[...], preferred_element_type=jnp.float32)
    y = y + b_ref[...].astype(jnp.float32)           # [1, TN] broadcasts over rows
    if apply_sigmoid:
        y = jax.nn.sigmoid(y)                        # EUP
    o_ref[...] = y.astype(o_ref.dtype)


def _decoder_kernel_pair(x1_ref, x2_ref, w_ref, b_ref, o_ref, *, h1, fuse_concat):
    """out = cat([x1, x2], 1) @ W + b with the concat fused into the matmul."""
    if fuse_concat:
        # Both splits are lane-aligned (multiples of 128): a single K=2*hidden dot.
        xc = jnp.concatenate([x1_ref[...], x2_ref[...]], axis=-1)
        y = jnp.dot(xc, w_ref[...], preferred_element_type=jnp.float32)
    else:
        # K-split matmul: x1 @ W[:h1] + x2 @ W[h1:].  The W slices are static
        # sub-views of the resident VMEM block (free when h1 % 8 == 0 for f32 /
        # % 16 for bf16; otherwise a small VMEM copy, still correct).
        y = jnp.dot(x1_ref[...], w_ref[:h1, :], preferred_element_type=jnp.float32)
        y = y + jnp.dot(x2_ref[...], w_ref[h1:, :],
                        preferred_element_type=jnp.float32)
    y = y + b_ref[...].astype(jnp.float32)
    o_ref[...] = y.astype(o_ref.dtype)


# ---------------------------------------------------------------------------
# Parameter preparation (one-time; keeps per-call HBM traffic activation-only)
# ---------------------------------------------------------------------------

def prepare_decoder_params(w, b):
    """Pad W/b lanes once (only when output_dim < 128).

    w: [in_features, out_features] (transpose of PyTorch's lin.weight), b: [out].
    """
    in_dim, out_dim = w.shape
    n_pad = 128 if out_dim < 128 else out_dim     # >=128: full-extent N block, no pad
    if n_pad != out_dim:
        w = jnp.pad(w, ((0, 0), (0, n_pad - out_dim)))
        b = jnp.pad(b, (0, n_pad - out_dim))
    return {"w": w, "b": jnp.reshape(b, (1, -1)), "out_dim": out_dim}


def init_decoder_params(key, hidden_dim, output_dim, dtype=jnp.float32):
    """Deterministic synthetic init (matches nn.Linear's uniform range)."""
    in_features = hidden_dim * 2
    kw, kb = jax.random.split(key)
    bound = 1.0 / (in_features ** 0.5)
    w = jax.random.uniform(kw, (in_features, output_dim), dtype, -bound, bound)
    b = jax.random.uniform(kb, (output_dim,), dtype, -bound, bound)
    return prepare_decoder_params(w, b)


# ---------------------------------------------------------------------------
# Forward
# ---------------------------------------------------------------------------

def decoder_forward(params, x1, x2=None, *, tm=512, tn=512):
    """Pallas equivalent of Decoder.forward.

    params: output of prepare_decoder_params / init_decoder_params
      ('w' [in_dim, n_pad], 'b' [1, n_pad], 'out_dim').
    Inputs/params are used in their stored dtypes (pass bf16 for a bf16 MXU path);
    accumulation is always f32.
    """
    w = params["w"]
    b = params["b"]
    if b.ndim == 1:
        b = b.reshape(1, -1)
    out_dim = int(params.get("out_dim", w.shape[1]))
    in_dim, n_pad = w.shape

    # Slow-path fallback for unprepared params (adds a per-call weight copy).
    if n_pad < 128:
        pad = 128 - n_pad
        w = jnp.pad(w, ((0, 0), (0, pad)))
        b = jnp.pad(b, ((0, 0), (0, pad)))
        n_pad = 128

    if x2 is not None:
        assert x1.shape[0] == x2.shape[0], (x1.shape, x2.shape)
        h1 = x1.shape[1]
        assert h1 + x2.shape[1] == in_dim, (x1.shape, x2.shape, w.shape)
        xs = (x1, x2)
        apply_sigmoid = False
        fuse_concat = (h1 % 128 == 0) and ((in_dim - h1) % 128 == 0)
        kernel = functools.partial(_decoder_kernel_pair, h1=h1,
                                   fuse_concat=fuse_concat)
    else:
        assert x1.shape[1] == in_dim, (x1.shape, w.shape)
        xs = (x1,)
        apply_sigmoid = True
        kernel = functools.partial(_decoder_kernel_single,
                                   apply_sigmoid=apply_sigmoid)

    batch = x1.shape[0]
    out_dtype = x1.dtype
    elt_x = jnp.dtype(x1.dtype).itemsize
    elt_w = jnp.dtype(w.dtype).itemsize
    elt_b = jnp.dtype(b.dtype).itemsize
    elt_o = jnp.dtype(out_dtype).itemsize

    # Generation-aware VMEM budget (v5e/v6e: 128 MiB physical, v7x: 64 MiB).
    try:
        vmem_cap = int(getattr(pltpu.get_tpu_info(), "vmem_capacity_bytes",
                               64 << 20))
    except Exception:
        vmem_cap = 64 << 20
    budget = int(0.55 * vmem_cap)

    def tile_bytes(tm_, tn_, w_bufs):
        return (2 * tm_ * in_dim * elt_x          # streamed x tile(s), double-buffered
                + w_bufs * in_dim * tn_ * elt_w   # weight tile
                + w_bufs * tn_ * elt_b            # bias tile
                + 2 * tm_ * tn_ * elt_o)          # output tile, double-buffered

    weight_bytes = in_dim * n_pad * elt_w
    # Weight-resident 1-D grid over batch when the full (padded) weight fits
    # comfortably, or when n_pad is not a lane multiple (full-extent N required).
    one_d = (n_pad % 128 != 0) or (weight_bytes <= budget // 3)

    tm = min(tm, batch)
    if one_d:
        tn = n_pad
        w_bufs = 1
    else:
        tn = min(max(128, (tn // 128) * 128), n_pad)
        w_bufs = 2

    # Auto-shrink tiles until the working set fits the budget (no OOM / spills).
    for _ in range(32):
        if tile_bytes(tm, tn, w_bufs) <= budget:
            break
        x_side = 2 * tm * (in_dim * elt_x + tn * elt_o)
        w_side = w_bufs * in_dim * tn * elt_w
        if tm > 8 and (x_side >= w_side or one_d or tn <= 128):
            tm = max(8, ((tm // 2) // 8) * 8)
        elif (not one_d) and tn > 128:
            tn = max(128, ((tn // 2) // 128) * 128)
        elif tm > 8:
            tm = max(8, ((tm // 2) // 8) * 8)
        else:
            break
    # TODO(synk): if in_dim ever gets so large that even tm=8 / tn=128 does not fit
    # VMEM, add a trailing "arbitrary" K grid axis with an f32 VMEM accumulator and
    # do the bias add / sigmoid only in the pl.when(k == last) finalize branch.

    # Megacore (v7x): ensure >=2 blocks along a parallel axis when batch allows it.
    if batch >= 16 and pl.cdiv(batch, tm) * pl.cdiv(n_pad, tn) == 1:
        tm = max(8, ((batch // 2) // 8) * 8)

    def spec(shape, index_map, *, single_buffered=False):
        if single_buffered:
            try:
                # Resident blocks don't need double buffering; halve their VMEM.
                return pl.BlockSpec(shape, index_map,
                                    pipeline_mode=pl.Buffered(1))
            except TypeError:          # older jax without pipeline_mode kwarg
                pass
        return pl.BlockSpec(shape, index_map)

    if one_d:
        grid = (pl.cdiv(batch, tm),)
        dim_sem = ("parallel",)
    else:
        # Out axis outermost, batch innermost -> W/bias stay resident across the
        # whole batch sweep (loaded once per out tile instead of per batch tile).
        grid = (pl.cdiv(n_pad, tn), pl.cdiv(batch, tm))
        dim_sem = ("parallel", "parallel")

    def make_specs(single_buffered):
        if one_d:
            in_specs = (
                [spec((tm, x.shape[1]), lambda i: (i, 0)) for x in xs]
                + [spec((in_dim, tn), lambda i: (0, 0),
                        single_buffered=single_buffered),
                   spec((1, tn), lambda i: (0, 0),
                        single_buffered=single_buffered)]
            )
            out_specs = spec((tm, tn), lambda i: (i, 0))
        else:
            in_specs = (
                [spec((tm, x.shape[1]), lambda j, i: (i, 0)) for x in xs]
                + [spec((in_dim, tn), lambda j, i: (0, j)),
                   spec((1, tn), lambda j, i: (0, j))]
            )
            out_specs = spec((tm, tn), lambda j, i: (i, j))
        return in_specs, out_specs

    # Always pass a vmem limit (>= per-generation default, <= 75% of physical),
    # so v5e's 16 MiB scoped default can never silently bite.
    needed = int(1.5 * tile_bytes(tm, tn, w_bufs)) + (2 << 20)
    vmem_limit = int(min(max(needed, 32 << 20), int(0.75 * vmem_cap)))

    flops = 2 * batch * in_dim * out_dim
    transcendentals = batch * out_dim if apply_sigmoid else 0
    bytes_accessed = (sum(int(x.size) * elt_x for x in xs)
                      + int(w.size) * elt_w + int(b.size) * elt_b
                      + batch * n_pad * elt_o)

    def run(single_buffered):
        in_specs, out_specs = make_specs(single_buffered)
        return pl.pallas_call(
            kernel,
            out_shape=jax.ShapeDtypeStruct((batch, n_pad), out_dtype),
            grid=grid,
            in_specs=in_specs,
            out_specs=out_specs,
            compiler_params=pltpu.CompilerParams(
                dimension_semantics=dim_sem,
                vmem_limit_bytes=vmem_limit,
            ),
            cost_estimate=pl.CostEstimate(
                flops=flops,
                transcendentals=transcendentals,
                bytes_accessed=bytes_accessed,
            ),
        )(*xs, w, b)

    if one_d:
        try:
            out_padded = run(True)
        except Exception:
            # Fallback if this jax build rejects single-buffered pipeline_mode.
            out_padded = run(False)
    else:
        out_padded = run(False)

    if n_pad != out_dim:
        out_padded = out_padded[:, :out_dim]
    return out_padded


# ---------------------------------------------------------------------------
# Self-test
# ---------------------------------------------------------------------------

if __name__ == "__main__":
    hidden_dim = 16
    output_dim = 32
    batch = 8

    key = jax.random.PRNGKey(0)
    kp, k1, k2, k3 = jax.random.split(key, 4)

    params = init_decoder_params(kp, hidden_dim, output_dim)
    # Unpadded views for the pure-JAX reference.
    w_ref = params["w"][:, :output_dim]
    b_ref = params["b"][0, :output_dim]

    # Branch 1: x1, x2 each [batch, hidden_dim] -> linear(concat), no sigmoid.
    x1 = jax.random.normal(k1, (batch, hidden_dim), jnp.float32)
    x2 = jax.random.normal(k2, (batch, hidden_dim), jnp.float32)
    out_cat = jax.block_until_ready(decoder_forward(params, x1, x2))
    ref_cat = jnp.concatenate([x1, x2], axis=1) @ w_ref + b_ref
    assert out_cat.shape == (batch, output_dim), out_cat.shape
    assert jnp.allclose(out_cat, ref_cat, atol=1e-5, rtol=1e-5)

    # Branch 2: single x1 of shape [batch, 2*hidden_dim] -> sigmoid(linear).
    x_full = jax.random.normal(k3, (batch, hidden_dim * 2), jnp.float32)
    out_sig = jax.block_until_ready(decoder_forward(params, x_full))
    ref_sig = jax.nn.sigmoid(x_full @ w_ref + b_ref)
    assert out_sig.shape == (batch, output_dim), out_sig.shape
    assert jnp.allclose(out_sig, ref_sig, atol=1e-5, rtol=1e-5)

    print("KERNEL_OK")
</pallas_src>

<mosaic_0001>
module attributes {stable_mosaic.version = 11 : i64} {
  func.func @_decoder_kernel_pair(%arg0: i32, %arg1: memref<8x16xf32, #tpu.memory_space<vmem>>, %arg2: memref<8x16xf32, #tpu.memory_space<vmem>>, %arg3: memref<32x128xf32, #tpu.memory_space<vmem>>, %arg4: memref<1x128xf32, #tpu.memory_space<vmem>>, %arg5: memref<8x128xf32, #tpu.memory_space<vmem>>) attributes {dimension_semantics = [#tpu.dimension_semantics<parallel>], iteration_bounds = array<i64: 1>, scalar_prefetch = 0 : i64, scratch_operands = 0 : i64, tpu.core_type = #tpu.core_type<tc>, window_params = [{transform_indices = @transform_0, window_bounds = array<i64: 8, 16>}, {transform_indices = @transform_1, window_bounds = array<i64: 8, 16>}, {pipeline_mode = #tpu.pipeline_mode<synchronous>, transform_indices = @transform_2, window_bounds = array<i64: 32, 128>}, {pipeline_mode = #tpu.pipeline_mode<synchronous>, transform_indices = @transform_3, window_bounds = array<i64: 1, 128>}, {transform_indices = @transform_4, window_bounds = array<i64: 8, 128>}]} {
    %c0 = arith.constant 0 : index
    %c0_0 = arith.constant 0 : index
    %0 = vector.load %arg1[%c0, %c0_0] : memref<8x16xf32, #tpu.memory_space<vmem>>, vector<8x16xf32>
    %c0_1 = arith.constant 0 : index
    %c0_2 = arith.constant 0 : index
    %1 = vector.load %arg3[%c0_1, %c0_2] : memref<32x128xf32, #tpu.memory_space<vmem>>, vector<16x128xf32>
    %cst = arith.constant dense<0.000000e+00> : vector<8x128xf32>
    %2 = tpu.matmul %0, %1, %cst {dimension_numbers = #tpu.dot_dimension_numbers<[1], [0], [0], [1], [0, 0, 1, 1], [], []>} : vector<8x16xf32>, vector<16x128xf32>, vector<8x128xf32> -> vector<8x128xf32>
    %c0_3 = arith.constant 0 : index
    %c0_4 = arith.constant 0 : index
    %3 = vector.load %arg2[%c0_3, %c0_4] : memref<8x16xf32, #tpu.memory_space<vmem>>, vector<8x16xf32>
    %c16 = arith.constant 16 : index
    %c0_5 = arith.constant 0 : index
    %4 = vector.load %arg3[%c16, %c0_5] : memref<32x128xf32, #tpu.memory_space<vmem>>, vector<16x128xf32>
    %cst_6 = arith.constant dense<0.000000e+00> : vector<8x128xf32>
    %5 = tpu.matmul %3, %4, %cst_6 {dimension_numbers = #tpu.dot_dimension_numbers<[1], [0], [0], [1], [0, 0, 1, 1], [], []>} : vector<8x16xf32>, vector<16x128xf32>, vector<8x128xf32> -> vector<8x128xf32>
    %6 = arith.addf %2, %5 : vector<8x128xf32>
    %c0_7 = arith.constant 0 : index
    %c0_8 = arith.constant 0 : index
    %7 = vector.load %arg4[%c0_7, %c0_8] : memref<1x128xf32, #tpu.memory_space<vmem>>, vector<1x128xf32>
    %8 = vector.broadcast %7 : vector<1x128xf32> to vector<8x128xf32>
    %9 = arith.addf %6, %8 : vector<8x128xf32>
    %c0_9 = arith.constant 0 : index
    %c0_10 = arith.constant 0 : index
    %10 = vector.load %arg5[%c0_9, %c0_10] : memref<8x128xf32, #tpu.memory_space<vmem>>, vector<8x128xf32>
    tpu.vector_store %arg5[%c0_9, %c0_10], %9 {strides = array<i32>} : memref<8x128xf32, #tpu.memory_space<vmem>>, vector<8x128xf32>,
    return
  }
  func.func @transform_0(%arg0: i32) -> (i32, i32) {
    %c0_i32 = arith.constant 0 : i32
    %c0_i32_0 = arith.constant 0 : i32
    return %arg0, %c0_i32 : i32, i32
  }
  func.func @transform_1(%arg0: i32) -> (i32, i32) {
    %c0_i32 = arith.constant 0 : i32
    %c0_i32_0 = arith.constant 0 : i32
    return %arg0, %c0_i32 : i32, i32
  }
  func.func @transform_2(%arg0: i32) -> (i32, i32) {
    %c0_i32 = arith.constant 0 : i32
    %c0_i32_0 = arith.constant 0 : i32
    %c0_i32_1 = arith.constant 0 : i32
    return %c0_i32, %c0_i32_0 : i32, i32
  }
  func.func @transform_3(%arg0: i32) -> (i32, i32) {
    %c0_i32 = arith.constant 0 : i32
    %c0_i32_0 = arith.constant 0 : i32
    %c0_i32_1 = arith.constant 0 : i32
    return %c0_i32, %c0_i32_0 : i32, i32
  }
  func.func @transform_4(%arg0: i32) -> (i32, i32) {
    %c0_i32 = arith.constant 0 : i32
    %c0_i32_0 = arith.constant 0 : i32
    return %arg0, %c0_i32 : i32, i32
  }
}

module attributes {stable_mosaic.version = 11 : i64} {
  func.func @_decoder_kernel_pair(%arg0: i32, %arg1: memref<8x16xf32, #tpu.memory_space<vmem>>, %arg2: memref<8x16xf32, #tpu.memory_space<vmem>>, %arg3: memref<32x128xf32, #tpu.memory_space<vmem>>, %arg4: memref<1x128xf32, #tpu.memory_space<vmem>>, %arg5: memref<8x128xf32, #tpu.memory_space<vmem>>) attributes {dimension_semantics = [#tpu.dimension_semantics<parallel>], iteration_bounds = array<i64: 1>, scalar_prefetch = 0 : i64, scratch_operands = 0 : i64, tpu.core_type = #tpu.core_type<tc>, window_params = [{transform_indices = @transform_0, window_bounds = array<i64: 8, 16>}, {transform_indices = @transform_1, window_bounds = array<i64: 8, 16>}, {pipeline_mode = #tpu.pipeline_mode<synchronous>, transform_indices = @transform_2, window_bounds = array<i64: 32, 128>}, {pipeline_mode = #tpu.pipeline_mode<synchronous>, transform_indices = @transform_3, window_bounds = array<i64: 1, 128>}, {transform_indices = @transform_4, window_bounds = array<i64: 8, 128>}]} {
    %c0 = arith.constant 0 : index
    %c0_0 = arith.constant 0 : index
    %0 = vector.load %arg1[%c0, %c0_0] : memref<8x16xf32, #tpu.memory_space<vmem>>, vector<8x16xf32>
    %c0_1 = arith.constant 0 : index
    %c0_2 = arith.constant 0 : index
    %1 = vector.load %arg3[%c0_1, %c0_2] : memref<32x128xf32, #tpu.memory_space<vmem>>, vector<16x128xf32>
    %cst = arith.constant dense<0.000000e+00> : vector<8x128xf32>
    %2 = tpu.matmul %0, %1, %cst {dimension_numbers = #tpu.dot_dimension_numbers<[1], [0], [0], [1], [0, 0, 1, 1], [], []>} : vector<8x16xf32>, vector<16x128xf32>, vector<8x128xf32> -> vector<8x128xf32>
    %c0_3 = arith.constant 0 : index
    %c0_4 = arith.constant 0 : index
    %3 = vector.load %arg2[%c0_3, %c0_4] : memref<8x16xf32, #tpu.memory_space<vmem>>, vector<8x16xf32>
    %c16 = arith.constant 16 : index
    %c0_5 = arith.constant 0 : index
    %4 = vector.load %arg3[%c16, %c0_5] : memref<32x128xf32, #tpu.memory_space<vmem>>, vector<16x128xf32>
    %cst_6 = arith.constant dense<0.000000e+00> : vector<8x128xf32>
    %5 = tpu.matmul %3, %4, %cst_6 {dimension_numbers = #tpu.dot_dimension_numbers<[1], [0], [0], [1], [0, 0, 1, 1], [], []>} : vector<8x16xf32>, vector<16x128xf32>, vector<8x128xf32> -> vector<8x128xf32>
    %6 = arith.addf %2, %5 : vector<8x128xf32>
    %c0_7 = arith.constant 0 : index
    %c0_8 = arith.constant 0 : index
    %7 = vector.load %arg4[%c0_7, %c0_8] : memref<1x128xf32, #tpu.memory_space<vmem>>, vector<1x128xf32>
    %8 = vector.broadcast %7 : vector<1x128xf32> to vector<8x128xf32>
    %9 = arith.addf %6, %8 : vector<8x128xf32>
    %c0_9 = arith.constant 0 : index
    %c0_10 = arith.constant 0 : index
    %10 = vector.load %arg5[%c0_9, %c0_10] : memref<8x128xf32, #tpu.memory_space<vmem>>, vector<8x128xf32>
    tpu.vector_store %arg5[%c0_9, %c0_10], %9 {strides = array<i32>} : memref<8x128xf32, #tpu.memory_space<vmem>>, vector<8x128xf32>,
    return
  }
  func.func @transform_0(%arg0: i32) -> (i32, i32) {
    %c0_i32 = arith.constant 0 : i32
    %c0_i32_0 = arith.constant 0 : i32
    return %arg0, %c0_i32 : i32, i32
  }
  func.func @transform_1(%arg0: i32) -> (i32, i32) {
    %c0_i32 = arith.constant 0 : i32
    %c0_i32_0 = arith.constant 0 : i32
    return %arg0, %c0_i32 : i32, i32
  }
  func.func @transform_2(%arg0: i32) -> (i32, i32) {
    %c0_i32 = arith.constant 0 : i32
    %c0_i32_0 = arith.constant 0 : i32
    %c0_i32_1 = arith.constant 0 : i32
    return %c0_i32, %c0_i32_0 : i32, i32
  }
  func.func @transform_3(%arg0: i32) -> (i32, i32) {
    %c0_i32 = arith.constant 0 : i32
    %c0_i32_0 = arith.constant 0 : i32
    %c0_i32_1 = arith.constant 0 : i32
    return %c0_i32, %c0_i32_0 : i32, i32
  }
  func.func @transform_4(%arg0: i32) -> (i32, i32) {
    %c0_i32 = arith.constant 0 : i32
    %c0_i32_0 = arith.constant 0 : i32
    return %arg0, %c0_i32 : i32, i32
  }
}

</mosaic_0001>

<llo_original>
// kernel: tpu_custom_call.1
$region0: #{tpu_custom_call.1}
  #allocation0 [shape = 'u32[]', space=smem, size = 0x4, offset = 0x4, fixed_abs, tag = 'smem constant byte address 0x4 - core index']
  #allocation1 [shape = 'u32[144,128]{1,0:T(1,128)}', space=vmem, size = 0x12000, scoped, tag = 'internal scratch']
  %s0 = inlined_call_operand.hbm [shape: f32[8,16], index: 0, kind: input, shape index: {}]
  %s1 = inlined_call_operand.hbm [shape: f32[8,16], index: 1, kind: input, shape index: {}]
  %s2 = inlined_call_operand.hbm [shape: f32[32,128], index: 2, kind: input, shape index: {}]
  %s3 = inlined_call_operand.vmem [shape: f32[1,128], index: 3, kind: input, shape index: {}]
  %s4 = inlined_call_operand.hbm [shape: f32[8,128], index: 4, kind: output, shape index: {}]
  %s5 = sld [smem:[#allocation0]]
  $region38: #{tpu_custom_call.1} parent=0
    _
  %s7 = ssub.s32 1, %s5
  %s8 = scalar_select 0, %s7, %s5
  $region1: #{tpu_custom_call.1} parent=0
    #allocation2 [shape = 'u8[4096]{0}', space=vmem, size = 0x1000, scoped, tag = 'input window, operand 0, single buffered']
    #allocation3 [shape = 's32[1]{0}', space=sflag, size = 0x4, scoped, tag = 'scoped memory for tpu_custom_call.1']
    #allocation4 [shape = 's32[1]{0}', space=sflag, size = 0x4, scoped, tag = 'scoped memory for tpu_custom_call.1']
    #allocation5 [shape = 'u8[4096]{0}', space=vmem, size = 0x1000, scoped, tag = 'input window, operand 1, single buffered']
    #allocation6 [shape = 's32[1]{0}', space=sflag, size = 0x4, scoped, tag = 'scoped memory for tpu_custom_call.1']
    #allocation7 [shape = 'u8[16384]{0}', space=vmem, size = 0x4000, scoped, tag = 'input window, operand 2, single buffered']
    #allocation8 [shape = 'u8[4096]{0}', space=vmem, size = 0x1000, scoped, tag = 'output window, operand 0, single buffered']
    %9 = vsyncpa [#allocation3], 0
    %10 = vsyncpa [#allocation6], 0
    %11 = vsyncpa [#allocation4], 0
    // Predicated region
    $region2: #{tpu_custom_call.1} parent=1 // pred_check
      _
    $region3: #{tpu_custom_call.1} parent=1 // pred_check_branch
      %13 = sbr.rel (0) target = $region5
    $region4: #{tpu_custom_call.1} parent=1 // pred_region
      %s15 = ssub.s32 128, 128
      %16 = vsyncadd [#allocation3], %s15
      %s18 = sshll.u32 [#allocation2], 4
      %s19 = int_to_ptr.vmem [resolvable:$true] %s18
      %21 = dma.hbm_to_vmem [thread:$0]  %s0, 128, %s19, [#allocation3]
    $region5: #{tpu_custom_call.1} parent=1 // pred_fallthru
      _
    // Predicated region
    $region6: #{tpu_custom_call.1} parent=1 // pred_check
      _
    $region7: #{tpu_custom_call.1} parent=1 // pred_check_branch
      %23 = sbr.rel (0) target = $region9
    $region8: #{tpu_custom_call.1} parent=1 // pred_region
      %s25 = ssub.s32 128, 128
      %26 = vsyncadd [#allocation6], %s25
      %s28 = sshll.u32 [#allocation5], 4
      %s29 = int_to_ptr.vmem [resolvable:$true] %s28
      %31 = dma.hbm_to_vmem [thread:$0]  %s1, 128, %s29, [#allocation6]
    $region9: #{tpu_custom_call.1} parent=1 // pred_fallthru
      _
    // Predicated region
    $region10: #{tpu_custom_call.1} parent=1 // pred_check
      _
    $region11: #{tpu_custom_call.1} parent=1 // pred_check_branch
      %33 = sbr.rel (0) target = $region13
    $region12: #{tpu_custom_call.1} parent=1 // pred_region
      %s35 = ssub.s32 512, 512
      %36 = vsyncadd [#allocation6], %s35
      %s37 = sshll.u32 [#allocation7], 4
      %s38 = int_to_ptr.vmem [resolvable:$true] %s37
      %43 = dma.hbm_to_vmem [thread:$0]  %s2, 512, %s38, [#allocation6], 128, 128, 8
    $region13: #{tpu_custom_call.1} parent=1 // pred_fallthru
      _
    // Predicated region
    $region14: #{tpu_custom_call.1} parent=1 // pred_check
      _
    $region15: #{tpu_custom_call.1} parent=1 // pred_check_branch
      %45 = sbr.rel (0) target = $region17
    $region16: #{tpu_custom_call.1} parent=1 // pred_region
      _
    $region17: #{tpu_custom_call.1} parent=1 // pred_fallthru
      _
    // Predicated region
    $region18: #{tpu_custom_call.1} parent=1 // pred_check
      _
    $region19: #{tpu_custom_call.1} parent=1 // pred_check_branch
      %47 = sbr.rel (0) target = $region21
    $region20: #{tpu_custom_call.1} parent=1 // pred_region
      %48 = dma.done [#allocation3], 128
    $region21: #{tpu_custom_call.1} parent=1 // pred_fallthru
      _
    // Predicated region
    $region22: #{tpu_custom_call.1} parent=1 // pred_check
      _
    $region23: #{tpu_custom_call.1} parent=1 // pred_check_branch
      %50 = sbr.rel (0) target = $region25
    $region24: #{tpu_custom_call.1} parent=1 // pred_region
      %51 = dma.done [#allocation6], 128
    $region25: #{tpu_custom_call.1} parent=1 // pred_fallthru
      _
    // Predicated region
    $region26: #{tpu_custom_call.1} parent=1 // pred_check
      _
    $region27: #{tpu_custom_call.1} parent=1 // pred_check_branch
      %53 = sbr.rel (0) target = $region29
    $region28: #{tpu_custom_call.1} parent=1 // pred_region
      %54 = dma.done [#allocation6], 512
    $region29: #{tpu_custom_call.1} parent=1 // pred_fallthru
      _
    %v55 = vld [vmem:[#allocation2] sm:$0xff]
    %v56 = vld [vmem:[#allocation7] sm:$0xff]
    %v57 = vld [vmem:[#allocation7 + $0x8] sm:$0xff]
    %v58 = vld [vmem:[#allocation5] sm:$0xff]
    %v59 = vld [vmem:[#allocation7 + $0x10] sm:$0xff]
    %v60 = vld [vmem:[#allocation7 + $0x18] sm:$0xff]
    %vm61 = vcmask 130048
    %v63 = vsel %vm61, %v58, 0
    %65 = vmatprep.subr.mxu0 0.0
    %66 = vmatpush1.msra.mxu0 %v59
    %67 = vmatprep.subr.mxu0 0.0
    %68 = vmatpush1.msra.mxu0 %v60
    %69 = vmatprep.subr.mxu0 0.0
    %70 = vmatpush1.msra.mxu0 0.0
    %71 = vmatprep.subr.mxu0 0.0
    %72 = vmatpush1.msra.mxu0 0.0
    %73 = vmatprep.subr.mxu0 0.0
    %74 = vmatpush1.msra.mxu0 0.0
    %75 = vmatprep.subr.mxu0 0.0
    %76 = vmatpush1.msra.mxu0 0.0
    %77 = vmatprep.subr.mxu0 0.0
    %78 = vmatpush1.msra.mxu0 0.0
    %79 = vmatprep.subr.mxu0 0.0
    %80 = vmatpush1.msra.mxu0 0.0
    %81 = vmatprep.subr.mxu0 0.0
    %82 = vmatpush1.msra.mxu0 0.0
    %83 = vmatprep.subr.mxu0 0.0
    %84 = vmatpush1.msra.mxu0 0.0
    %85 = vmatprep.subr.mxu0 0.0
    %86 = vmatpush1.msra.mxu0 0.0
    %87 = vmatprep.subr.mxu0 0.0
    %88 = vmatpush1.msra.mxu0 0.0
    %89 = vmatprep.subr.mxu0 0.0
    %90 = vmatpush1.msra.mxu0 0.0
    %91 = vmatprep.subr.mxu0 0.0
    %92 = vmatpush1.msra.mxu0 0.0
    %93 = vmatprep.subr.mxu0 0.0
    %94 = vmatpush1.msra.mxu0 0.0
    %95 = vmatprep.subr.mxu0 0.0
    %96 = vmatpush1.msra.mxu0 0.0
    %97 = vmatprep.subr.mxu0 0.0
    %98 = vmatpush1.msra.mxu0 0.0
    %99 = vmatprep.subr.mxu0 0.0
    %100 = vmatpush1.msra.mxu0 0.0
    %101 = vmatprep.subr.mxu0 0.0
    %102 = vmatpush1.msra.mxu0 0.0
    %103 = vmatprep.subr.mxu0 0.0
    %104 = vmatpush1.msra.mxu0 0.0
    %105 = vmatprep.subr.mxu0 0.0
    %106 = vmatpush1.msra.mxu0 0.0
    %107 = vmatprep.subr.mxu0 0.0
    %108 = vmatpush1.msra.mxu0 0.0
    %109 = vmatprep.subr.mxu0 0.0
    %110 = vmatpush1.msra.mxu0 0.0
    %111 = vmatprep.subr.mxu0 0.0
    %112 = vmatpush1.msra.mxu0 0.0
    %113 = vmatprep.subr.mxu0 0.0
    %114 = vmatpush1.msra.mxu0 0.0
    %115 = vmatprep.subr.mxu0 0.0
    %116 = vmatpush1.msra.mxu0 0.0
    %117 = vmatprep.subr.mxu0 0.0
    %118 = vmatpush1.msra.mxu0 0.0
    %119 = vmatprep.subr.mxu0 0.0
    %120 = vmatpush1.msra.mxu0 0.0
    %121 = vmatprep.subr.mxu0 0.0
    %122 = vmatpush1.msra.mxu0 0.0
    %123 = vmatprep.subr.mxu0 0.0
    %124 = vmatpush1.msra.mxu0 0.0
    %125 = vmatprep.subr.mxu0 0.0
    %126 = vmatpush1.msra.mxu0 0.0
    %127 = vmatprep.subr.mxu0 0.0
    %128 = vmatpush1.msra.mxu0 0.0
    %129 = vmatprep.mubr.f32.mxu0 0.0
    %130 = vmatmul.mubr.f32.gmra.mrb[0].mxu0 %v63
    %v131 = vpop.f32.mrb[0].mxu0
    %v132 = vadd.f32 0.0, %v131
    %v133 = vpop.f32.mrb[0].mxu0
    %134 = vdwg.mxu0
    %v136 = vsel %vm61, %v55, 0
    %138 = vmatprep.subr.mxu0 0.0
    %139 = vmatpush1.msra.mxu0 %v56
    %140 = vmatprep.subr.mxu0 0.0
    %141 = vmatpush1.msra.mxu0 %v57
    %142 = vmatprep.subr.mxu0 0.0
    %143 = vmatpush1.msra.mxu0 0.0
    %144 = vmatprep.subr.mxu0 0.0
    %145 = vmatpush1.msra.mxu0 0.0
    %146 = vmatprep.subr.mxu0 0.0
    %147 = vmatpush1.msra.mxu0 0.0
    %148 = vmatprep.subr.mxu0 0.0
    %149 = vmatpush1.msra.mxu0 0.0
    %150 = vmatprep.subr.mxu0 0.0
    %151 = vmatpush1.msra.mxu0 0.0
    %152 = vmatprep.subr.mxu0 0.0
    %153 = vmatpush1.msra.mxu0 0.0
    %154 = vmatprep.subr.mxu0 0.0
    %155 = vmatpush1.msra.mxu0 0.0
    %156 = vmatprep.subr.mxu0 0.0
    %157 = vmatpush1.msra.mxu0 0.0
    %158 = vmatprep.subr.mxu0 0.0
    %159 = vmatpush1.msra.mxu0 0.0
    %160 = vmatprep.subr.mxu0 0.0
    %161 = vmatpush1.msra.mxu0 0.0
    %162 = vmatprep.subr.mxu0 0.0
    %163 = vmatpush1.msra.mxu0 0.0
    %164 = vmatprep.subr.mxu0 0.0
    %165 = vmatpush1.msra.mxu0 0.0
    %166 = vmatprep.subr.mxu0 0.0
    %167 = vmatpush1.msra.mxu0 0.0
    %168 = vmatprep.subr.mxu0 0.0
    %169 = vmatpush1.msra.mxu0 0.0
    %170 = vmatprep.subr.mxu0 0.0
    %171 = vmatpush1.msra.mxu0 0.0
    %172 = vmatprep.subr.mxu0 0.0
    %173 = vmatpush1.msra.mxu0 0.0
    %174 = vmatprep.subr.mxu0 0.0
    %175 = vmatpush1.msra.mxu0 0.0
    %176 = vmatprep.subr.mxu0 0.0
    %177 = vmatpush1.msra.mxu0 0.0
    %178 = vmatprep.subr.mxu0 0.0
    %179 = vmatpush1.msra.mxu0 0.0
    %180 = vmatprep.subr.mxu0 0.0
    %181 = vmatpush1.msra.mxu0 0.0
    %182 = vmatprep.subr.mxu0 0.0
    %183 = vmatpush1.msra.mxu0 0.0
    %184 = vmatprep.subr.mxu0 0.0
    %185 = vmatpush1.msra.mxu0 0.0
    %186 = vmatprep.subr.mxu0 0.0
    %187 = vmatpush1.msra.mxu0 0.0
    %188 = vmatprep.subr.mxu0 0.0
    %189 = vmatpush1.msra.mxu0 0.0
    %190 = vmatprep.subr.mxu0 0.0
    %191 = vmatpush1.msra.mxu0 0.0
    %192 = vmatprep.subr.mxu0 0.0
    %193 = vmatpush1.msra.mxu0 0.0
    %194 = vmatprep.subr.mxu0 0.0
    %195 = vmatpush1.msra.mxu0 0.0
    %196 = vmatprep.subr.mxu0 0.0
    %197 = vmatpush1.msra.mxu0 0.0
    %198 = vmatprep.subr.mxu0 0.0
    %199 = vmatpush1.msra.mxu0 0.0
    %200 = vmatprep.subr.mxu0 0.0
    %201 = vmatpush1.msra.mxu0 0.0
    %202 = vmatprep.mubr.f32.mxu0 0.0
    %203 = vmatmul.mubr.f32.gmra.mrb[0].mxu0 %v136
    %v204 = vpop.f32.mrb[0].mxu0
    %v205 = vadd.f32 %v132, %v204
    %v206 = vpop.f32.mrb[0].mxu0
    %207 = vdwg.mxu0
    %v208 = vld [vmem:[%s3] sm:$0x1]
    %v210 = vlaneseq
    %v211 = vshrl.u32 %v210, 7
    %v212 = vsub.s32 0, %v211
    %v213 = vrot.slane %v208, %v212
    %v215 = vadd.f32 %v205, %v213
    %216 = vst [vmem:[#allocation8] sm:$0xff] %v215
    // Predicated region
    $region30: #{tpu_custom_call.1} parent=1 // pred_check
      _
    $region31: #{tpu_custom_call.1} parent=1 // pred_check_branch
      %218 = sbr.rel (0) target = $region33
    $region32: #{tpu_custom_call.1} parent=1 // pred_region
      %s220 = ssub.s32 128, 128
      %221 = vsyncadd [#allocation4], %s220
      %s223 = sshll.u32 [#allocation8], 4
      %s224 = int_to_ptr.vmem [resolvable:$true] %s223
      %226 = dma.vmem_to_hbm [thread:$0]  %s224, 128, %s4, [#allocation4]
    $region33: #{tpu_custom_call.1} parent=1 // pred_fallthru
      _
    // Predicated region
    $region34: #{tpu_custom_call.1} parent=1 // pred_check
      _
    $region35: #{tpu_custom_call.1} parent=1 // pred_check_branch
      %228 = sbr.rel (0) target = $region37
    $region36: #{tpu_custom_call.1} parent=1 // pred_region
      %229 = dma.done [#allocation4], 128
    $region37: #{tpu_custom_call.1} parent=1 // pred_fallthru
      _
    %230 = vsyncpa [#allocation3], 1
    %231 = vsyncpa [#allocation6], 1
    %232 = vsyncpa [#allocation4], 1

// kernel: tpu_custom_call.1
$region0: #{tpu_custom_call.1}
  #allocation0 [shape = 'u32[]', space=smem, size = 0x4, offset = 0x4, fixed_abs, tag = 'smem constant byte address 0x4 - core index']
  #allocation1 [shape = 'u32[144,128]{1,0:T(1,128)}', space=vmem, size = 0x12000, scoped, tag = 'internal scratch']
  %s0 = inlined_call_operand.hbm [shape: f32[8,16], index: 0, kind: input, shape index: {}]
  %s1 = inlined_call_operand.hbm [shape: f32[8,16], index: 1, kind: input, shape index: {}]
  %s2 = inlined_call_operand.hbm [shape: f32[32,128], index: 2, kind: input, shape index: {}]
  %s3 = inlined_call_operand.vmem [shape: f32[1,128], index: 3, kind: input, shape index: {}]
  %s4 = inlined_call_operand.hbm [shape: f32[8,128], index: 4, kind: output, shape index: {}]
  %s5 = sld [smem:[#allocation0]]
  $region38: #{tpu_custom_call.1} parent=0
    _
  %s7 = ssub.s32 1, %s5
  %s8 = scalar_select 0, %s7, %s5
  $region1: #{tpu_custom_call.1} parent=0
    #allocation2 [shape = 'u8[4096]{0}', space=vmem, size = 0x1000, scoped, tag = 'input window, operand 0, single buffered']
    #allocation3 [shape = 's32[1]{0}', space=sflag, size = 0x4, scoped, tag = 'scoped memory for tpu_custom_call.1']
    #allocation4 [shape = 's32[1]{0}', space=sflag, size = 0x4, scoped, tag = 'scoped memory for tpu_custom_call.1']
    #allocation5 [shape = 'u8[4096]{0}', space=vmem, size = 0x1000, scoped, tag = 'input window, operand 1, single buffered']
    #allocation6 [shape = 's32[1]{0}', space=sflag, size = 0x4, scoped, tag = 'scoped memory for tpu_custom_call.1']
    #allocation7 [shape = 'u8[16384]{0}', space=vmem, size = 0x4000, scoped, tag = 'input window, operand 2, single buffered']
    #allocation8 [shape = 'u8[4096]{0}', space=vmem, size = 0x1000, scoped, tag = 'output window, operand 0, single buffered']
    %9 = vsyncpa [#allocation3], 0
    %10 = vsyncpa [#allocation6], 0
    %11 = vsyncpa [#allocation4], 0
    // Predicated region
    $region2: #{tpu_custom_call.1} parent=1 // pred_check
      _
    $region3: #{tpu_custom_call.1} parent=1 // pred_check_branch
      %13 = sbr.rel (0) target = $region5
    $region4: #{tpu_custom_call.1} parent=1 // pred_region
      %s15 = ssub.s32 128, 128
      %16 = vsyncadd [#allocation3], %s15
      %s18 = sshll.u32 [#allocation2], 4
      %s19 = int_to_ptr.vmem [resolvable:$true] %s18
      %21 = dma.hbm_to_vmem [thread:$0]  %s0, 128, %s19, [#allocation3]
    $region5: #{tpu_custom_call.1} parent=1 // pred_fallthru
      _
    // Predicated region
    $region6: #{tpu_custom_call.1} parent=1 // pred_check
      _
    $region7: #{tpu_custom_call.1} parent=1 // pred_check_branch
      %23 = sbr.rel (0) target = $region9
    $region8: #{tpu_custom_call.1} parent=1 // pred_region
      %s25 = ssub.s32 128, 128
      %26 = vsyncadd [#allocation6], %s25
      %s28 = sshll.u32 [#allocation5], 4
      %s29 = int_to_ptr.vmem [resolvable:$true] %s28
      %31 = dma.hbm_to_vmem [thread:$0]  %s1, 128, %s29, [#allocation6]
    $region9: #{tpu_custom_call.1} parent=1 // pred_fallthru
      _
    // Predicated region
    $region10: #{tpu_custom_call.1} parent=1 // pred_check
      _
    $region11: #{tpu_custom_call.1} parent=1 // pred_check_branch
      %33 = sbr.rel (0) target = $region13
    $region12: #{tpu_custom_call.1} parent=1 // pred_region
      %s35 = ssub.s32 512, 512
      %36 = vsyncadd [#allocation6], %s35
      %s37 = sshll.u32 [#allocation7], 4
      %s38 = int_to_ptr.vmem [resolvable:$true] %s37
      %43 = dma.hbm_to_vmem [thread:$0]  %s2, 512, %s38, [#allocation6], 128, 128, 8
    $region13: #{tpu_custom_call.1} parent=1 // pred_fallthru
      _
    // Predicated region
    $region14: #{tpu_custom_call.1} parent=1 // pred_check
      _
    $region15: #{tpu_custom_call.1} parent=1 // pred_check_branch
      %45 = sbr.rel (0) target = $region17
    $region16: #{tpu_custom_call.1} parent=1 // pred_region
      _
    $region17: #{tpu_custom_call.1} parent=1 // pred_fallthru
      _
    // Predicated region
    $region18: #{tpu_custom_call.1} parent=1 // pred_check
      _
    $region19: #{tpu_custom_call.1} parent=1 // pred_check_branch
      %47 = sbr.rel (0) target = $region21
    $region20: #{tpu_custom_call.1} parent=1 // pred_region
      %48 = dma.done [#allocation3], 128
    $region21: #{tpu_custom_call.1} parent=1 // pred_fallthru
      _
    // Predicated region
    $region22: #{tpu_custom_call.1} parent=1 // pred_check
      _
    $region23: #{tpu_custom_call.1} parent=1 // pred_check_branch
      %50 = sbr.rel (0) target = $region25
    $region24: #{tpu_custom_call.1} parent=1 // pred_region
      %51 = dma.done [#allocation6], 128
    $region25: #{tpu_custom_call.1} parent=1 // pred_fallthru
      _
    // Predicated region
    $region26: #{tpu_custom_call.1} parent=1 // pred_check
      _
    $region27: #{tpu_custom_call.1} parent=1 // pred_check_branch
      %53 = sbr.rel (0) target = $region29
    $region28: #{tpu_custom_call.1} parent=1 // pred_region
      %54 = dma.done [#allocation6], 512
    $region29: #{tpu_custom_call.1} parent=1 // pred_fallthru
      _
    %v55 = vld [vmem:[#allocation2] sm:$0xff]
    %v56 = vld [vmem:[#allocation7] sm:$0xff]
    %v57 = vld [vmem:[#allocation7 + $0x8] sm:$0xff]
    %v58 = vld [vmem:[#allocation5] sm:$0xff]
    %v59 = vld [vmem:[#allocation7 + $0x10] sm:$0xff]
    %v60 = vld [vmem:[#allocation7 + $0x18] sm:$0xff]
    %vm61 = vcmask 130048
    %v63 = vsel %vm61, %v58, 0
    %65 = vmatprep.subr.mxu0 0.0
    %66 = vmatpush1.msra.mxu0 %v59
    %67 = vmatprep.subr.mxu0 0.0
    %68 = vmatpush1.msra.mxu0 %v60
    %69 = vmatprep.subr.mxu0 0.0
    %70 = vmatpush1.msra.mxu0 0.0
    %71 = vmatprep.subr.mxu0 0.0
    %72 = vmatpush1.msra.mxu0 0.0
    %73 = vmatprep.subr.mxu0 0.0
    %74 = vmatpush1.msra.mxu0 0.0
    %75 = vmatprep.subr.mxu0 0.0
    %76 = vmatpush1.msra.mxu0 0.0
    %77 = vmatprep.subr.mxu0 0.0
    %78 = vmatpush1.msra.mxu0 0.0
    %79 = vmatprep.subr.mxu0 0.0
    %80 = vmatpush1.msra.mxu0 0.0
    %81 = vmatprep.subr.mxu0 0.0
    %82 = vmatpush1.msra.mxu0 0.0
    %83 = vmatprep.subr.mxu0 0.0
    %84 = vmatpush1.msra.mxu0 0.0
    %85 = vmatprep.subr.mxu0 0.0
    %86 = vmatpush1.msra.mxu0 0.0
    %87 = vmatprep.subr.mxu0 0.0
    %88 = vmatpush1.msra.mxu0 0.0
    %89 = vmatprep.subr.mxu0 0.0
    %90 = vmatpush1.msra.mxu0 0.0
    %91 = vmatprep.subr.mxu0 0.0
    %92 = vmatpush1.msra.mxu0 0.0
    %93 = vmatprep.subr.mxu0 0.0
    %94 = vmatpush1.msra.mxu0 0.0
    %95 = vmatprep.subr.mxu0 0.0
    %96 = vmatpush1.msra.mxu0 0.0
    %97 = vmatprep.subr.mxu0 0.0
    %98 = vmatpush1.msra.mxu0 0.0
    %99 = vmatprep.subr.mxu0 0.0
    %100 = vmatpush1.msra.mxu0 0.0
    %101 = vmatprep.subr.mxu0 0.0
    %102 = vmatpush1.msra.mxu0 0.0
    %103 = vmatprep.subr.mxu0 0.0
    %104 = vmatpush1.msra.mxu0 0.0
    %105 = vmatprep.subr.mxu0 0.0
    %106 = vmatpush1.msra.mxu0 0.0
    %107 = vmatprep.subr.mxu0 0.0
    %108 = vmatpush1.msra.mxu0 0.0
    %109 = vmatprep.subr.mxu0 0.0
    %110 = vmatpush1.msra.mxu0 0.0
    %111 = vmatprep.subr.mxu0 0.0
    %112 = vmatpush1.msra.mxu0 0.0
    %113 = vmatprep.subr.mxu0 0.0
    %114 = vmatpush1.msra.mxu0 0.0
    %115 = vmatprep.subr.mxu0 0.0
    %116 = vmatpush1.msra.mxu0 0.0
    %117 = vmatprep.subr.mxu0 0.0
    %118 = vmatpush1.msra.mxu0 0.0
    %119 = vmatprep.subr.mxu0 0.0
    %120 = vmatpush1.msra.mxu0 0.0
    %121 = vmatprep.subr.mxu0 0.0
    %122 = vmatpush1.msra.mxu0 0.0
    %123 = vmatprep.subr.mxu0 0.0
    %124 = vmatpush1.msra.mxu0 0.0
    %125 = vmatprep.subr.mxu0 0.0
    %126 = vmatpush1.msra.mxu0 0.0
    %127 = vmatprep.subr.mxu0 0.0
    %128 = vmatpush1.msra.mxu0 0.0
    %129 = vmatprep.mubr.f32.mxu0 0.0
    %130 = vmatmul.mubr.f32.gmra.mrb[0].mxu0 %v63
    %v131 = vpop.f32.mrb[0].mxu0
    %v132 = vadd.f32 0.0, %v131
    %v133 = vpop.f32.mrb[0].mxu0
    %134 = vdwg.mxu0
    %v136 = vsel %vm61, %v55, 0
    %138 = vmatprep.subr.mxu0 0.0
    %139 = vmatpush1.msra.mxu0 %v56
    %140 = vmatprep.subr.mxu0 0.0
    %141 = vmatpush1.msra.mxu0 %v57
    %142 = vmatprep.subr.mxu0 0.0
    %143 = vmatpush1.msra.mxu0 0.0
    %144 = vmatprep.subr.mxu0 0.0
    %145 = vmatpush1.msra.mxu0 0.0
    %146 = vmatprep.subr.mxu0 0.0
    %147 = vmatpush1.msra.mxu0 0.0
    %148 = vmatprep.subr.mxu0 0.0
    %149 = vmatpush1.msra.mxu0 0.0
    %150 = vmatprep.subr.mxu0 0.0
    %151 = vmatpush1.msra.mxu0 0.0
    %152 = vmatprep.subr.mxu0 0.0
    %153 = vmatpush1.msra.mxu0 0.0
    %154 = vmatprep.subr.mxu0 0.0
    %155 = vmatpush1.msra.mxu0 0.0
    %156 = vmatprep.subr.mxu0 0.0
    %157 = vmatpush1.msra.mxu0 0.0
    %158 = vmatprep.subr.mxu0 0.0
    %159 = vmatpush1.msra.mxu0 0.0
    %160 = vmatprep.subr.mxu0 0.0
    %161 = vmatpush1.msra.mxu0 0.0
    %162 = vmatprep.subr.mxu0 0.0
    %163 = vmatpush1.msra.mxu0 0.0
    %164 = vmatprep.subr.mxu0 0.0
    %165 = vmatpush1.msra.mxu0 0.0
    %166 = vmatprep.subr.mxu0 0.0
    %167 = vmatpush1.msra.mxu0 0.0
    %168 = vmatprep.subr.mxu0 0.0
    %169 = vmatpush1.msra.mxu0 0.0
    %170 = vmatprep.subr.mxu0 0.0
    %171 = vmatpush1.msra.mxu0 0.0
    %172 = vmatprep.subr.mxu0 0.0
    %173 = vmatpush1.msra.mxu0 0.0
    %174 = vmatprep.subr.mxu0 0.0
    %175 = vmatpush1.msra.mxu0 0.0
    %176 = vmatprep.subr.mxu0 0.0
    %177 = vmatpush1.msra.mxu0 0.0
    %178 = vmatprep.subr.mxu0 0.0
    %179 = vmatpush1.msra.mxu0 0.0
    %180 = vmatprep.subr.mxu0 0.0
    %181 = vmatpush1.msra.mxu0 0.0
    %182 = vmatprep.subr.mxu0 0.0
    %183 = vmatpush1.msra.mxu0 0.0
    %184 = vmatprep.subr.mxu0 0.0
    %185 = vmatpush1.msra.mxu0 0.0
    %186 = vmatprep.subr.mxu0 0.0
    %187 = vmatpush1.msra.mxu0 0.0
    %188 = vmatprep.subr.mxu0 0.0
    %189 = vmatpush1.msra.mxu0 0.0
    %190 = vmatprep.subr.mxu0 0.0
    %191 = vmatpush1.msra.mxu0 0.0
    %192 = vmatprep.subr.mxu0 0.0
    %193 = vmatpush1.msra.mxu0 0.0
    %194 = vmatprep.subr.mxu0 0.0
    %195 = vmatpush1.msra.mxu0 0.0
    %196 = vmatprep.subr.mxu0 0.0
    %197 = vmatpush1.msra.mxu0 0.0
    %198 = vmatprep.subr.mxu0 0.0
    %199 = vmatpush1.msra.mxu0 0.0
    %200 = vmatprep.subr.mxu0 0.0
    %201 = vmatpush1.msra.mxu0 0.0
    %202 = vmatprep.mubr.f32.mxu0 0.0
    %203 = vmatmul.mubr.f32.gmra.mrb[0].mxu0 %v136
    %v204 = vpop.f32.mrb[0].mxu0
    %v205 = vadd.f32 %v132, %v204
    %v206 = vpop.f32.mrb[0].mxu0
    %207 = vdwg.mxu0
    %v208 = vld [vmem:[%s3] sm:$0x1]
    %v210 = vlaneseq
    %v211 = vshrl.u32 %v210, 7
    %v212 = vsub.s32 0, %v211
    %v213 = vrot.slane %v208, %v212
    %v215 = vadd.f32 %v205, %v213
    %216 = vst [vmem:[#allocation8] sm:$0xff] %v215
    // Predicated region
    $region30: #{tpu_custom_call.1} parent=1 // pred_check
      _
    $region31: #{tpu_custom_call.1} parent=1 // pred_check_branch
      %218 = sbr.rel (0) target = $region33
    $region32: #{tpu_custom_call.1} parent=1 // pred_region
      %s220 = ssub.s32 128, 128
      %221 = vsyncadd [#allocation4], %s220
      %s223 = sshll.u32 [#allocation8], 4
      %s224 = int_to_ptr.vmem [resolvable:$true] %s223
      %226 = dma.vmem_to_hbm [thread:$0]  %s224, 128, %s4, [#allocation4]
    $region33: #{tpu_custom_call.1} parent=1 // pred_fallthru
      _
    // Predicated region
    $region34: #{tpu_custom_call.1} parent=1 // pred_check
      _
    $region35: #{tpu_custom_call.1} parent=1 // pred_check_branch
      %228 = sbr.rel (0) target = $region37
    $region36: #{tpu_custom_call.1} parent=1 // pred_region
      %229 = dma.done [#allocation4], 128
    $region37: #{tpu_custom_call.1} parent=1 // pred_fallthru
      _
    %230 = vsyncpa [#allocation3], 1
    %231 = vsyncpa [#allocation6], 1
    %232 = vsyncpa [#allocation4], 1

</llo_original>
